<compile_context>
chip_gen: v5e
topology: v5e:2x2
jax: 0.10.0
libtpu: 0.0.40
codegen_flags: <defaults>
</compile_context>

<pallas_src>
import functools

import jax
import jax.numpy as jnp
from jax.experimental import pallas as pl
from jax.experimental.pallas import tpu as pltpu


# ----------------------------------------------------------------------------
# Kernels
# ----------------------------------------------------------------------------
def _matmul_kernel_single_k(x_ref, w_ref, o_ref, *, compute_dtype):
    """Whole contraction in one K slab: write straight to the output tile."""
    x = x_ref[...]
    w = w_ref[...]
    if compute_dtype is not None:
        x = x.astype(compute_dtype)
        w = w.astype(compute_dtype)
    # (TM, K) . (TN, K) -> (TM, TN): contract the last dim of BOTH operands so
    # the weight can stay in PyTorch (out, in) layout (no transpose copy).
    o_ref[...] = jax.lax.dot_general(
        x, w,
        dimension_numbers=(((1,), (1,)), ((), ())),
        preferred_element_type=jnp.float32,
    ).astype(o_ref.dtype)


def _matmul_kernel_multi_k(x_ref, w_ref, o_ref, acc_ref, *, compute_dtype):
    """K split across the last grid axis: f32 accumulator (P3 pattern)."""
    @pl.when(pl.program_id(2) == 0)
    def _():
        acc_ref[...] = jnp.zeros_like(acc_ref)

    x = x_ref[...]
    w = w_ref[...]
    if compute_dtype is not None:
        x = x.astype(compute_dtype)
        w = w.astype(compute_dtype)

    acc_ref[...] += jax.lax.dot_general(
        x, w,
        dimension_numbers=(((1,), (1,)), ((), ())),
        preferred_element_type=jnp.float32,
    )

    @pl.when(pl.program_id(2) == pl.num_programs(2) - 1)
    def _():
        o_ref[...] = acc_ref[...].astype(o_ref.dtype)


# ----------------------------------------------------------------------------
# Tiling helpers
# ----------------------------------------------------------------------------
def _cdiv(a, b):
    return -(-a // b)


def _round_up(v, m):
    return _cdiv(v, m) * m


def _vmem_budget_bytes():
    """~75% of physical VMEM; conservative 48 MiB fallback (v7x has 64 MiB/TC)."""
    cap = None
    try:
        info = pltpu.get_tpu_info()
        cap = getattr(info, "vmem_capacity_bytes", None)
    except Exception:
        cap = None
    if not cap:
        cap = 64 * 1024 * 1024
    return int(cap) * 3 // 4


def _pick_tiles(M, N, K, x_dtype, w_dtype, out_dtype, vmem_budget):
    """Pick (tm, tn, tk, k_pad) obeying (8,128) tiling rules + VMEM budget."""
    x_sz = jnp.dtype(x_dtype).itemsize
    w_sz = jnp.dtype(w_dtype).itemsize
    o_sz = jnp.dtype(out_dtype).itemsize
    sublane = 16 if x_sz == 2 else 8

    def ws_bytes(tm, tn, tk, multi_k):
        # Double-buffered x/w/out tiles (+ single-buffered f32 accumulator).
        b = 2 * (tm * tk * x_sz + tn * tk * w_sz + tm * tn * o_sz)
        if multi_k:
            b += tm * tn * 4
        return b

    chosen = None
    cap_pairs = [(1024, 1024), (1024, 512), (512, 512), (512, 256),
                 (256, 256), (256, 128), (128, 128)]
    for cap_m, cap_n in cap_pairs:
        tm = min(cap_m, _round_up(max(M, 1), sublane))
        tn = N if N <= cap_n else cap_n

        # 1) Preferred: single K slab (no accumulator, no X re-read across j).
        if ws_bytes(tm, tn, K, multi_k=False) <= vmem_budget:
            chosen = (tm, tn, K, K)
            break

        # 2) Multi-slab K: largest 128-multiple tk >= 512 that fits the budget.
        tk_max = 0
        for cand in (4096, 3584, 3072, 2560, 2048, 1536, 1024, 768, 512):
            if cand < K and ws_bytes(tm, tn, cand, multi_k=True) <= vmem_budget:
                tk_max = cand
                break
        if tk_max == 0:
            continue  # shrink tm/tn rather than going below tk = 512

        # Prefer an exact divisor of K (128-multiple, >= 512) -> no padding.
        tk = 0
        for cand in range(tk_max, 511, -128):
            if K % cand == 0:
                tk = cand
                break
        if tk:
            chosen = (tm, tn, tk, K)
        else:
            chosen = (tm, tn, tk_max, _round_up(K, tk_max))
        break

    if chosen is None:
        # Extreme fallback (never expected in practice).
        tm = min(128, _round_up(max(M, 1), sublane))
        tn = N if N <= 128 else 128
        tk = K if K <= 512 else 512
        chosen = (tm, tn, tk, _round_up(K, tk))

    tm, tn, tk, k_pad = chosen

    # v7x has 2 TensorCores: make sure the parallel (i, j) grid has >= 2 blocks
    # so "parallel" dimension_semantics can shard work across both cores.
    if _cdiv(M, tm) * _cdiv(N, tn) < 2:
        if N > 128:
            tn = _round_up(_cdiv(N, 2), 128)     # lane-dense 128-multiple tile
        elif M > sublane:
            tm = _round_up(_cdiv(M, 2), sublane)  # sublane-aligned M split

    return tm, tn, tk, k_pad


# ----------------------------------------------------------------------------
# Forward wrapper
# ----------------------------------------------------------------------------
def lora_linear_forward(x, weight, *, compute_dtype=None):
    """Pallas equivalent of LoRALinear.forward with self.lora is None.

    x:      (..., in_channel)
    weight: (out_channel, in_channel)  -- PyTorch nn.Linear layout (NOT transposed)
    compute_dtype: optional MXU operand dtype (e.g. jnp.bfloat16, f32 accum);
        None keeps exact f32 nn.Linear numerics.
    returns (..., out_channel)
    """
    in_channel = x.shape[-1]
    out_channel = weight.shape[0]
    assert weight.shape == (out_channel, in_channel)

    lead_shape = x.shape[:-1]
    x2d = x.reshape(-1, in_channel)               # (M, K)
    M, K, N = x2d.shape[0], in_channel, out_channel

    budget = _vmem_budget_bytes()
    tm, tn, tk, k_pad = _pick_tiles(M, N, K, x.dtype, weight.dtype, x.dtype, budget)

    if k_pad != K:
        # Rare path: zero-pad the contraction dim so tk divides it exactly.
        # TODO(synk): hoist the weight padding out of the per-call path.
        x2d = jnp.pad(x2d, ((0, 0), (0, k_pad - K)))
        weight = jnp.pad(weight, ((0, 0), (0, k_pad - K)))

    k_steps = k_pad // tk

    cost = pl.CostEstimate(
        flops=2 * M * N * K,
        transcendentals=0,
        bytes_accessed=int(M * K * jnp.dtype(x.dtype).itemsize
                           + N * K * jnp.dtype(weight.dtype).itemsize
                           + M * N * jnp.dtype(x.dtype).itemsize),
    )

    if k_steps == 1:
        # Common case: whole K in one slab, no accumulator scratch, 2-D grid.
        grid = (_cdiv(M, tm), _cdiv(N, tn))
        kernel = functools.partial(_matmul_kernel_single_k,
                                   compute_dtype=compute_dtype)
        in_specs = [
            pl.BlockSpec((tm, tk), lambda i, j: (i, 0)),   # activations
            pl.BlockSpec((tn, tk), lambda i, j: (j, 0)),   # weight (out, in)
        ]
        out_specs = pl.BlockSpec((tm, tn), lambda i, j: (i, j))
        scratch_shapes = []
        dim_sem = ("parallel", "parallel")
    else:
        # K split across the last ("arbitrary") grid axis with f32 accumulator.
        grid = (_cdiv(M, tm), _cdiv(N, tn), k_steps)
        kernel = functools.partial(_matmul_kernel_multi_k,
                                   compute_dtype=compute_dtype)
        in_specs = [
            pl.BlockSpec((tm, tk), lambda i, j, k: (i, k)),
            pl.BlockSpec((tn, tk), lambda i, j, k: (j, k)),
        ]
        out_specs = pl.BlockSpec((tm, tn), lambda i, j, k: (i, j))
        scratch_shapes = [pltpu.VMEM((tm, tn), jnp.float32)]
        dim_sem = ("parallel", "parallel", "arbitrary")

    out = pl.pallas_call(
        kernel,
        out_shape=jax.ShapeDtypeStruct((M, N), x.dtype),
        grid_spec=pltpu.PrefetchScalarGridSpec(
            num_scalar_prefetch=0,
            grid=grid,
            in_specs=in_specs,
            out_specs=out_specs,
            scratch_shapes=scratch_shapes,
        ),
        compiler_params=pltpu.CompilerParams(
            dimension_semantics=dim_sem,
            vmem_limit_bytes=budget,
        ),
        cost_estimate=cost,
    )(x2d, weight)

    return out.reshape(*lead_shape, N)


if __name__ == "__main__":
    # Small shapes consistent with the module: batch=2, seq=8, hidden in/out.
    batch, seq = 2, 8
    in_channel, out_channel = 32, 64

    key = jax.random.PRNGKey(0)
    kx, kw = jax.random.split(key)
    x = jax.random.normal(kx, (batch, seq, in_channel), dtype=jnp.float32)
    # Deterministic "nn.Linear" weight init (Kaiming-uniform-like bound).
    bound = 1.0 / (in_channel ** 0.5)
    weight = jax.random.uniform(
        kw, (out_channel, in_channel), minval=-bound, maxval=bound,
        dtype=jnp.float32,
    )

    fwd = jax.jit(lora_linear_forward)
    y = fwd(x, weight)
    y = jax.block_until_ready(y)

    # Reference check against plain JAX (same math as torch's F.linear).
    y_ref = jnp.einsum("bsk,nk->bsn", x, weight)
    assert y.shape == (batch, seq, out_channel)
    assert jnp.allclose(y, y_ref, atol=1e-5, rtol=1e-5)

    print("KERNEL_OK")
</pallas_src>

<mosaic_0001>
module attributes {stable_mosaic.version = 11 : i64} {
  func.func @_matmul_kernel_single_k(%arg0: i32, %arg1: i32, %arg2: memref<8x32xf32, #tpu.memory_space<vmem>>, %arg3: memref<64x32xf32, #tpu.memory_space<vmem>>, %arg4: memref<8x64xf32, #tpu.memory_space<vmem>>) attributes {dimension_semantics = [#tpu.dimension_semantics<parallel>, #tpu.dimension_semantics<parallel>], iteration_bounds = array<i64: 2, 1>, scalar_prefetch = 0 : i64, scratch_operands = 0 : i64, tpu.core_type = #tpu.core_type<tc>, window_params = [{transform_indices = @transform_0, window_bounds = array<i64: 8, 32>}, {transform_indices = @transform_1, window_bounds = array<i64: 64, 32>}, {transform_indices = @transform_2, window_bounds = array<i64: 8, 64>}]} {
    %c0 = arith.constant 0 : index
    %c0_0 = arith.constant 0 : index
    %0 = vector.load %arg2[%c0, %c0_0] : memref<8x32xf32, #tpu.memory_space<vmem>>, vector<8x32xf32>
    %c0_1 = arith.constant 0 : index
    %c0_2 = arith.constant 0 : index
    %1 = vector.load %arg3[%c0_1, %c0_2] : memref<64x32xf32, #tpu.memory_space<vmem>>, vector<64x32xf32>
    %cst = arith.constant dense<0.000000e+00> : vector<8x64xf32>
    %2 = tpu.matmul %0, %1, %cst {dimension_numbers = #tpu.dot_dimension_numbers<[1], [1], [0], [0], [0, 0, 1, 0], [], []>} : vector<8x32xf32>, vector<64x32xf32>, vector<8x64xf32> -> vector<8x64xf32>
    %c0_3 = arith.constant 0 : index
    %c0_4 = arith.constant 0 : index
    %3 = vector.load %arg4[%c0_3, %c0_4] : memref<8x64xf32, #tpu.memory_space<vmem>>, vector<8x64xf32>
    tpu.vector_store %arg4[%c0_3, %c0_4], %2 {strides = array<i32>} : memref<8x64xf32, #tpu.memory_space<vmem>>, vector<8x64xf32>,
    return
  }
  func.func @transform_0(%arg0: i32, %arg1: i32) -> (i32, i32) {
    %c0_i32 = arith.constant 0 : i32
    %c0_i32_0 = arith.constant 0 : i32
    return %arg0, %c0_i32 : i32, i32
  }
  func.func @transform_1(%arg0: i32, %arg1: i32) -> (i32, i32) {
    %c0_i32 = arith.constant 0 : i32
    %c0_i32_0 = arith.constant 0 : i32
    return %arg1, %c0_i32 : i32, i32
  }
  func.func @transform_2(%arg0: i32, %arg1: i32) -> (i32, i32) {
    %c0_i32 = arith.constant 0 : i32
    return %arg0, %arg1 : i32, i32
  }
}

</mosaic_0001>

<llo_original>
// kernel: lora_linear_forward.1
$region0: #{lora_linear_forward.1}
  #allocation0 [shape = 'u32[]', space=smem, size = 0x4, offset = 0x4, fixed_abs, tag = 'smem constant byte address 0x4 - core index']
  #allocation1 [shape = 'u32[72,128]{1,0:T(1,128)}', space=vmem, size = 0x9000, scoped, tag = 'internal scratch']
  %s0 = inlined_call_operand.vmem [shape: f32[16,32], index: 0, kind: input, shape index: {}]
  %s1 = inlined_call_operand.vmem [shape: f32[64,32], index: 1, kind: input, shape index: {}]
  %s2 = inlined_call_operand.hbm [shape: f32[16,64], index: 2, kind: output, shape index: {}]
  %s3 = sld [smem:[#allocation0]]
  $region41: #{lora_linear_forward.1} parent=0
    _
  %s5 = ssub.s32 1, %s3
  %s6 = scalar_select 0, %s5, %s3
  $region1: #{lora_linear_forward.1} parent=0
    #allocation2 [shape = 'u8[8192]{0}', space=vmem, size = 0x2000, scoped, tag = 'output window, operand 0']
    #allocation3 [shape = 's32[2]{0}', space=sflag, size = 0x8, scoped, tag = 'scoped memory for lora_linear_forward.1']
    %7 = vsyncpa [#allocation3], 0
    %s8 = scalar_lea.sflag [#allocation3], 1
    %9 = vsyncpa %s8, 0
    loop: start=0, step=1, limit=4
    $region2: #{lora_linear_forward.1} parent=1 // loop_pre_header
      _
    $region3: #{lora_linear_forward.1} parent=1 // loop_header
      %s11 = sphi 0, %s15
      %p12 = scmp.ge.s32.totalorder %s11, 4
      %s18 = sphi 0, %s30
      %s19 = sphi 0, %s26
      %s20 = sphi 0, %s18
      %s21 = sphi 0, %s19
      %s22 = sphi 0, %s20
      %s23 = sphi 0, %s21
      %s33 = sphi 0, %s35
      %s36 = sphi 0, %s33
      %s37 = sphi 0, %s36
      %s53 = sphi 0, %s37
      %s59 = sphi 0, %s61
      %s62 = sphi 0, %s59
      %s63 = sphi 0, %s62
      %s79 = sphi 0, %s63
      %s87 = sphi 0, %s89
      %s90 = sphi 0, %s87
      %s91 = sphi 0, %s90
      %s107 = sphi 0, %s91
    $region4: #{lora_linear_forward.1} parent=1 // loop_header_branch
      %14 = sbr.rel (%p12) target = $region8
    $region5: #{lora_linear_forward.1} parent=1 // loop_body
      %s16 = ssub.s32 %s11, 1
      %s17 = ssub.s32 %s11, 2
      %s24 = sadd.s32 1, %s19
      %p25 = scmp.ge.s32.totalorder %s24, 1
      %s26 = scalar_select %p25, 0, %s24
      %s27 = sadd.s32 1, %s18
      %s28 = scalar_select %p25, %s27, %s18
      %p29 = scmp.ge.s32.totalorder %s28, 2
      %s30 = scalar_select %p29, 0, %s28
      %s31 = ssub.s32 %s18, %s30
      %p32 = scmp.eq.s32.totalorder %s31, 0
      %s34 = sadd.s32 %s33, 1
      %s35 = scalar_select %p32, %s33, %s34
      %p38 = pneg %p32
      %p39 = scmp.eq.s32.totalorder %s11, 1
      %p40 = por %p38, %p39
      %p41 = scmp.ne.s32.totalorder %s33, %s36
      %p42 = scmp.eq.s32.totalorder %s11, 0
      %p43 = por %p41, %p42
      %p44 = scmp.ne.s32.totalorder %s33, %s36
      %p45 = scmp.eq.s32.totalorder %s16, 1
      %p46 = por %p44, %p45
      %p47 = scmp.ne.s32.totalorder %s36, %s37
      %p48 = scmp.eq.s32.totalorder %s16, 0
      %p49 = por %p47, %p48
      %p50 = scmp.ne.s32.totalorder %s36, %s37
      %p51 = scmp.eq.s32.totalorder %s17, 1
      %p52 = por %p50, %p51
      %p54 = scmp.ne.s32.totalorder %s37, %s53
      %p55 = scmp.eq.s32.totalorder %s17, 0
      %p56 = por %p54, %p55
      %s57 = ssub.s32 %s19, %s26
      %p58 = scmp.eq.s32.totalorder %s57, 0
      %s60 = sadd.s32 %s59, 1
      %s61 = scalar_select %p58, %s59, %s60
      %p64 = pneg %p58
      %p65 = scmp.eq.s32.totalorder %s11, 1
      %p66 = por %p64, %p65
      %p67 = scmp.ne.s32.totalorder %s59, %s62
      %p68 = scmp.eq.s32.totalorder %s11, 0
      %p69 = por %p67, %p68
      %p70 = scmp.ne.s32.totalorder %s59, %s62
      %p71 = scmp.eq.s32.totalorder %s16, 1
      %p72 = por %p70, %p71
      %p73 = scmp.ne.s32.totalorder %s62, %s63
      %p74 = scmp.eq.s32.totalorder %s16, 0
      %p75 = por %p73, %p74
      %p76 = scmp.ne.s32.totalorder %s62, %s63
      %p77 = scmp.eq.s32.totalorder %s17, 1
      %p78 = por %p76, %p77
      %p80 = scmp.ne.s32.totalorder %s63, %s79
      %p81 = scmp.eq.s32.totalorder %s17, 0
      %p82 = por %p80, %p81
      %s83 = ssub.s32 %s18, %s30
      %s84 = ssub.s32 %s19, %s26
      %s85 = sor.u32 %s83, %s84
      %p86 = scmp.eq.s32.totalorder %s85, 0
      %s88 = sadd.s32 %s87, 1
      %s89 = scalar_select %p86, %s87, %s88
      %p92 = pneg %p86
      %p93 = scmp.eq.s32.totalorder %s11, 1
      %p94 = por %p92, %p93
      %p95 = scmp.ne.s32.totalorder %s87, %s90
      %p96 = scmp.eq.s32.totalorder %s11, 0
      %p97 = por %p95, %p96
      %p98 = scmp.ne.s32.totalorder %s87, %s90
      %p99 = scmp.eq.s32.totalorder %s16, 1
      %p100 = por %p98, %p99
      %p101 = scmp.ne.s32.totalorder %s90, %s91
      %p102 = scmp.eq.s32.totalorder %s16, 0
      %p103 = por %p101, %p102
      %p104 = scmp.ne.s32.totalorder %s90, %s91
      %p105 = scmp.eq.s32.totalorder %s17, 1
      %p106 = por %p104, %p105
      %p108 = scmp.ne.s32.totalorder %s91, %s107
      %p109 = scmp.eq.s32.totalorder %s17, 0
      %p110 = por %p108, %p109
      %p111 = scmp.le.s32.totalorder 1, %s11
      %p112 = scmp.lt.s32.totalorder %s11, 3
      %p113 = pnand %p111, %p112
      %p114 = pneg %p113
      // Predicated region
      $region9: #{lora_linear_forward.1} parent=5 // pred_check
        _
      $region10: #{lora_linear_forward.1} parent=5 // pred_check_branch
        %116 = sbr.rel (%p113) target = $region12
      $region11: #{lora_linear_forward.1} parent=5 // pred_region
        %s117 = ssub.s32 %s11, 1
        // Predicated region
        $region13: #{lora_linear_forward.1} parent=11 // pred_check
          %p118 = pneg %p75
        $region14: #{lora_linear_forward.1} parent=11 // pred_check_branch
          %120 = sbr.rel (%p118) target = $region16
        $region15: #{lora_linear_forward.1} parent=11 // pred_region
          %s121 = smul.u32 8, %s21
          %p122 = scmp.lt.s32.totalorder %s121, 7
          %s123 = scalar_select %p122, %s121, 7
          %s124 = smul.addr %s123, 8
          %s125 = scalar_lea.vmem %s1, %s124
          %s126 = smul.u32 8, %s21
        $region16: #{lora_linear_forward.1} parent=11 // pred_fallthru
          _
      $region12: #{lora_linear_forward.1} parent=5 // pred_fallthru
        _
      %p127 = scmp.lt.s32.totalorder %s11, 2
      // Predicated region
      $region17: #{lora_linear_forward.1} parent=5 // pred_check
        %p128 = pneg %p127
      $region18: #{lora_linear_forward.1} parent=5 // pred_check_branch
        %130 = sbr.rel (%p128) target = $region20
      $region19: #{lora_linear_forward.1} parent=5 // pred_region
        // Predicated region
        $region21: #{lora_linear_forward.1} parent=19 // pred_check
          %p131 = pneg %p43
        $region22: #{lora_linear_forward.1} parent=19 // pred_check_branch
          %133 = sbr.rel (%p131) target = $region24
        $region23: #{lora_linear_forward.1} parent=19 // pred_region
          %p134 = scmp.lt.s32.totalorder %s18, 1
          %s135 = scalar_select %p134, %s18, 1
          %s136 = smul.addr %s135, 8
          %s137 = scalar_lea.vmem %s0, %s136
        $region24: #{lora_linear_forward.1} parent=19 // pred_fallthru
          _
      $region20: #{lora_linear_forward.1} parent=5 // pred_fallthru
        _
      %p138 = scmp.le.s32.totalorder 1, %s11
      %p139 = scmp.lt.s32.totalorder %s11, 3
      %p140 = pnand %p138, %p139
      %p141 = pneg %p140
      // Predicated region
      $region25: #{lora_linear_forward.1} parent=5 // pred_check
        _
      $region26: #{lora_linear_forward.1} parent=5 // pred_check_branch
        %143 = sbr.rel (%p140) target = $region28
      $region27: #{lora_linear_forward.1} parent=5 // pred_region
        %s144 = ssub.s32 %s11, 1
        %p145 = scmp.lt.s32.totalorder %s20, 1
        %s146 = scalar_select %p145, %s20, 1
        %s147 = smul.addr %s146, 8
        %s148 = scalar_lea.vmem %s0, %s147
        %p149 = pneg %p49
        %p150 = pneg %p46
        %s151 = smul.u32 8, %s21
        %p152 = scmp.lt.s32.totalorder %s151, 7
        %s153 = scalar_select %p152, %s151, 7
        %s154 = smul.addr %s153, 8
        %s155 = scalar_lea.vmem %s1, %s154
        %p156 = pneg %p75
        %p157 = pneg %p72
        %p158 = pneg %p103
        %p159 = pneg %p100
        %s160 = sand.u32 %s90, 1
        %s161 = scalar_lea.sflag [#allocation3], %s160
        %s162 = sand.u32 %s90, 1
        %s163 = smul.addr %s162, 8
        %s164 = scalar_lea.vmem [#allocation2], %s163
        %p165 = scmp.lt.s32.totalorder %s20, 1
        %s166 = scalar_select %p165, %s20, 1
        %s167 = smul.addr %s166, 8
        %s168 = scalar_lea.vmem %s0, %s167
        %s169 = smul.u32 8, %s21
        %p170 = scmp.lt.s32.totalorder %s169, 7
        %s171 = scalar_select %p170, %s169, 7
        %s172 = smul.addr %s171, 8
        %s173 = scalar_lea.vmem %s1, %s172
        %s174 = smul.u32 8, %s21
        %v175 = vld [vmem:[%s168] sm:$0xff]
        %v176 = vld [vmem:[%s173] sm:$0xff]
        %v177 = vld [vmem:[%s173 + $0x8] sm:$0xff]
        %v178 = vld [vmem:[%s173 + $0x10] sm:$0xff]
        %v179 = vld [vmem:[%s173 + $0x18] sm:$0xff]
        %v180 = vld [vmem:[%s173 + $0x20] sm:$0xff]
        %v181 = vld [vmem:[%s173 + $0x28] sm:$0xff]
        %v182 = vld [vmem:[%s173 + $0x30] sm:$0xff]
        %v183 = vld [vmem:[%s173 + $0x38] sm:$0xff]
        %vm184 = vcmask 261120
        %v186 = vsel %vm184, %v175, 0
        %v189 = vsel %vm184, %v176, 0
        %v192 = vsel %vm184, %v177, 0
        %v195 = vsel %vm184, %v178, 0
        %v198 = vsel %vm184, %v179, 0
        %v201 = vsel %vm184, %v180, 0
        %v204 = vsel %vm184, %v181, 0
        %v207 = vsel %vm184, %v182, 0
        %v210 = vsel %vm184, %v183, 0
        %212 = vmatpush.xpose.msra.mxu0 0.0
        %213 = vmatpush.xpose.msra.mxu0 0.0
        %214 = vmatpush.xpose.msra.mxu0 0.0
        %215 = vmatpush.xpose.msra.mxu0 0.0
        %216 = vmatpush.xpose.msra.mxu0 0.0
        %217 = vmatpush.xpose.msra.mxu0 0.0
        %218 = vmatpush.xpose.msra.mxu0 0.0
        %219 = vmatpush.xpose.msra.mxu0 0.0
        %220 = vmatpush.xpose.msra.mxu0 %v210
        %221 = vmatpush.xpose.msra.mxu0 %v207
        %222 = vmatpush.xpose.msra.mxu0 %v204
        %223 = vmatpush.xpose.msra.mxu0 %v201
        %224 = vmatpush.xpose.msra.mxu0 %v198
        %225 = vmatpush.xpose.msra.mxu0 %v195
        %226 = vmatpush.xpose.msra.mxu0 %v192
        %227 = vmatpush.xpose.msra.mxu0 %v189
        %228 = vmatmul.f32.gmra.mxu0 %v186
        %v229 = vpop.f32.mrf.mxu0
        %v230 = vadd.f32 0.0, %v229
        %231 = vdwg.mxu0
        %vm232 = vcmask 523264
        %233 = vst.msk [vmem:[%s164] sm:$0xff] %vm232, %v230
        %s234 = sand.u32 %s90, 1
        %s235 = scalar_lea.sflag [#allocation3], %s234
        %s236 = sand.u32 %s90, 1
        %s237 = smul.addr %s236, 8
        %s238 = scalar_lea.vmem [#allocation2], %s237
        // Predicated region
        $region29: #{lora_linear_forward.1} parent=27 // pred_check
          %p239 = pneg %p100
        $region30: #{lora_linear_forward.1} parent=27 // pred_check_branch
          %241 = sbr.rel (%p239) target = $region32
        $region31: #{lora_linear_forward.1} parent=27 // pred_region
          %243 = vsyncadd %s235, 0
          %s244 = sadd.s32 %s21, %s20
          %s245 = smul.addr %s244, 8
          %s246 = scalar_lea.hbm %s2, %s245
          %s248 = sshll.u32 %s238, 4
          %s249 = int_to_ptr.vmem [resolvable:$true] %s248
          %s250 = sshll.u32 %s246, 4
          %s251 = int_to_ptr.hbm [resolvable:$true] %s250
          %253 = dma.vmem_to_hbm [thread:$0]  %s249, 128, %s251, %s235
        $region32: #{lora_linear_forward.1} parent=27 // pred_fallthru
          _
      $region28: #{lora_linear_forward.1} parent=5 // pred_fallthru
        _
      %p254 = scmp.le.s32.totalorder 2, %s11
      // Predicated region
      $region33: #{lora_linear_forward.1} parent=5 // pred_check
        %p255 = pneg %p254
      $region34: #{lora_linear_forward.1} parent=5 // pred_check_branch
        %257 = sbr.rel (%p255) target = $region36
      $region35: #{lora_linear_forward.1} parent=5 // pred_region
        %s258 = ssub.s32 %s11, 2
        // Predicated region
        $region37: #{lora_linear_forward.1} parent=35 // pred_check
          %p259 = pneg %p106
        $region38: #{lora_linear_forward.1} parent=35 // pred_check_branch
          %261 = sbr.rel (%p259) target = $region40
        $region39: #{lora_linear_forward.1} parent=35 // pred_region
          %s262 = sand.u32 %s91, 1
          %s263 = scalar_lea.sflag [#allocation3], %s262
          %s264 = sand.u32 %s91, 1
          %s265 = smul.addr %s264, 8
          %s266 = scalar_lea.vmem [#allocation2], %s265
          %268 = dma.done %s263, 128
        $region40: #{lora_linear_forward.1} parent=35 // pred_fallthru
          _
      $region36: #{lora_linear_forward.1} parent=5 // pred_fallthru
        _
    $region6: #{lora_linear_forward.1} parent=1 // loop_footer
      %s15 = sadd.s32 1, %s11
    $region7: #{lora_linear_forward.1} parent=1 // loop_footer_branch
      %10 = sbr.rel target = $region3
    $region8: #{lora_linear_forward.1} parent=1 // loop_exit
      _
    %269 = vsyncpa [#allocation3], 1
    %s270 = scalar_lea.sflag [#allocation3], 1
    %271 = vsyncpa %s270, 1

</llo_original>
